<compile_context>
chip_gen: v5e
topology: v5e:2x2
jax: 0.10.0
libtpu: 0.0.40
codegen_flags: <defaults>
</compile_context>

<pallas_src>
import jax
import jax.numpy as jnp
from jax.experimental import pallas as pl
from jax.experimental.pallas import tpu as pltpu


# ------------------------------- helpers ----------------------------------- #

def _round_up(x, mult):
    return ((x + mult - 1) // mult) * mult


# ----------------------------- Pallas kernels ------------------------------ #

def _box_mlp_kernel(x_ref, w1_ref, b1_ref, w2_ref, b2_ref, o_ref, acc_ref):
    """relu(relu(x @ w1 + b1) @ w2 + b2), K-tiled over d_in.

    Grid = (rows, k).  acc_ref accumulates x @ w1 in f32 across k; on the last
    k step the f32 epilogue (bias + ReLU), the second (small) matmul and the
    store run.  Output block index is independent of k -> accumulator pattern.
    """
    k = pl.program_id(1)

    @pl.when(k == 0)
    def _():
        acc_ref[...] = jnp.zeros_like(acc_ref)

    acc_ref[...] += jnp.dot(x_ref[...], w1_ref[...],
                            preferred_element_type=jnp.float32)

    @pl.when(k == pl.num_programs(1) - 1)
    def _():
        h = jnp.maximum(acc_ref[...] + b1_ref[...], 0.0)        # f32 epilogue
        y = jnp.dot(h.astype(w2_ref.dtype), w2_ref[...],
                    preferred_element_type=jnp.float32)
        o_ref[...] = jnp.maximum(y + b2_ref[...], 0.0).astype(o_ref.dtype)


def _rel_fc_kernel(s_ref, ob_ref, ws_ref, wo_ref, b_ref, o_ref):
    """relu(subj @ W_s + obj @ W_o + b) — fused, no explicit concat needed."""
    y = jnp.dot(s_ref[...], ws_ref[...], preferred_element_type=jnp.float32)
    y = y + jnp.dot(ob_ref[...], wo_ref[...], preferred_element_type=jnp.float32)
    o_ref[...] = jnp.maximum(y + b_ref[...], 0.0).astype(o_ref.dtype)


# ------------------------------ wrappers ----------------------------------- #

_VMEM_LIMIT = 32 * 1024 * 1024   # safe on v5e/v6e (128 MiB phys) and v7x (64 MiB)


def box_mlp(x, w1, b1, w2, b2, *, tile_k, tile_m=512):
    """x: [m, d_in_p] bf16 (d_in already padded to a multiple of tile_k).
    w1: [d_in_p, hid_p] bf16, w2: [hid_p, rep_p] bf16, biases f32 [1, *_p]."""
    m, d_in_p = x.shape
    hid_p = w1.shape[1]
    rep_p = w2.shape[1]

    tm = min(tile_m, _round_up(m, 16))       # 16-row granularity (bf16 sublanes)
    mp = _round_up(m, tm)
    if mp != m:
        x = jnp.pad(x, ((0, mp - m), (0, 0)))
    n_k = d_in_p // tile_k

    out = pl.pallas_call(
        _box_mlp_kernel,
        out_shape=jax.ShapeDtypeStruct((mp, rep_p), jnp.bfloat16),
        grid_spec=pltpu.PrefetchScalarGridSpec(
            num_scalar_prefetch=0,
            grid=(mp // tm, n_k),
            in_specs=[
                pl.BlockSpec((tm, tile_k), lambda i, k: (i, k)),       # x tile
                pl.BlockSpec((tile_k, hid_p), lambda i, k: (k, 0)),    # w1 K-slab
                pl.BlockSpec((1, hid_p), lambda i, k: (0, 0)),         # b1 (resident)
                pl.BlockSpec((hid_p, rep_p), lambda i, k: (0, 0)),     # w2 (resident)
                pl.BlockSpec((1, rep_p), lambda i, k: (0, 0)),         # b2 (resident)
            ],
            out_specs=pl.BlockSpec((tm, rep_p), lambda i, k: (i, 0)),
            scratch_shapes=[pltpu.VMEM((tm, hid_p), jnp.float32)],
        ),
        compiler_params=pltpu.CompilerParams(
            dimension_semantics=("parallel", "arbitrary"),
            vmem_limit_bytes=_VMEM_LIMIT),
    )(x, w1, b1, w2, b2)
    return out[:m]


def rel_fc(subj, obj, w_s, w_o, b_rel, *, tile_m=512):
    """subj/obj: [k_pairs, rep_p] bf16; w_s/w_o: [rep_p, rep_p] bf16; b f32."""
    m, rep_p = subj.shape

    tm = min(tile_m, _round_up(m, 16))
    mp = _round_up(m, tm)
    if mp != m:
        subj = jnp.pad(subj, ((0, mp - m), (0, 0)))
        obj = jnp.pad(obj, ((0, mp - m), (0, 0)))

    out = pl.pallas_call(
        _rel_fc_kernel,
        out_shape=jax.ShapeDtypeStruct((mp, rep_p), jnp.float32),
        grid_spec=pltpu.PrefetchScalarGridSpec(
            num_scalar_prefetch=0,
            grid=(mp // tm,),
            in_specs=[
                pl.BlockSpec((tm, rep_p), lambda i: (i, 0)),    # subj rows
                pl.BlockSpec((tm, rep_p), lambda i: (i, 0)),    # obj rows
                pl.BlockSpec((rep_p, rep_p), lambda i: (0, 0)),  # W_s resident
                pl.BlockSpec((rep_p, rep_p), lambda i: (0, 0)),  # W_o resident
                pl.BlockSpec((1, rep_p), lambda i: (0, 0)),      # bias resident
            ],
            out_specs=pl.BlockSpec((tm, rep_p), lambda i: (i, 0)),
        ),
        compiler_params=pltpu.CompilerParams(
            dimension_semantics=("parallel",),
            vmem_limit_bytes=_VMEM_LIMIT),
    )(subj, obj, w_s, w_o, b_rel)
    return out[:m]


# ------------------------- ROI pooling (glue, JAX) -------------------------- #
# TODO(synk): the feature-map gather below is plain-JAX/XLA (arbitrary per-box
# bin gather has no clean tiled Pallas equivalent at this size); a
# scalar-prefetch Pallas gather kernel would remove the HBM round-trip.

def roi_pool_single(feat, boxes, pool_size):
    """feat: [C, H, W]; boxes: [M, 4] as (x1, y1, x2, y2) in pixel coords.
    Nearest-sample a pool_size x pool_size grid inside each box."""
    C, H, W = feat.shape
    x1, y1, x2, y2 = boxes[:, 0], boxes[:, 1], boxes[:, 2], boxes[:, 3]
    bw = jnp.maximum(x2 - x1, 1.0)
    bh = jnp.maximum(y2 - y1, 1.0)
    grid = (jnp.arange(pool_size, dtype=jnp.float32) + 0.5) / pool_size
    xs = x1[:, None] + grid[None, :] * bw[:, None]            # [M, P]
    ys = y1[:, None] + grid[None, :] * bh[:, None]            # [M, P]
    xi = jnp.clip(jnp.floor(xs).astype(jnp.int32), 0, W - 1)
    yi = jnp.clip(jnp.floor(ys).astype(jnp.int32), 0, H - 1)
    pooled = feat[:, yi[:, :, None], xi[:, None, :]]          # [C, M, P, P]
    return jnp.transpose(pooled, (1, 0, 2, 3))                # [M, C, P, P]


# ------------------------- module-like wrapper ------------------------------ #

class PallasROIRelationFeatureExtractor:
    """Concrete realization of the abstract ROIRelationFeatureExtractor."""

    def __init__(self, in_channels, pool_size=4, hidden=64,
                 representation_size=32, key=None):
        self.pool_size = pool_size
        self.n_dim = in_channels * pool_size * pool_size
        self.hidden = hidden
        self.representation_size = representation_size

        # lane-dense padded dims
        self.hid_p = _round_up(hidden, 128)
        self.rep_p = _round_up(representation_size, 128)
        d_in_p = _round_up(self.n_dim, 128)
        if d_in_p > 512:                       # K-tile the contraction at scale
            d_in_p = _round_up(self.n_dim, 512)
            self.tile_k = 512
        else:
            self.tile_k = d_in_p
        self.d_in_p = d_in_p

        if key is None:
            key = jax.random.PRNGKey(42)
        k1, k2, k3 = jax.random.split(key, 3)
        s1 = 1.0 / jnp.sqrt(self.n_dim)
        s2 = 1.0 / jnp.sqrt(hidden)
        s3 = 1.0 / jnp.sqrt(2 * representation_size)
        w1 = jax.random.normal(k1, (self.n_dim, hidden), jnp.float32) * s1
        w2 = jax.random.normal(k2, (hidden, representation_size), jnp.float32) * s2
        w_rel = jax.random.normal(
            k3, (2 * representation_size, representation_size), jnp.float32) * s3

        rep = representation_size
        # zero-pad weights to lane-dense shapes; bf16 for MXU operands, f32 biases
        self.w1_p = (jnp.zeros((self.d_in_p, self.hid_p), jnp.float32)
                     .at[:self.n_dim, :hidden].set(w1)).astype(jnp.bfloat16)
        self.b1_p = jnp.zeros((1, self.hid_p), jnp.float32)
        self.w2_p = (jnp.zeros((self.hid_p, self.rep_p), jnp.float32)
                     .at[:hidden, :rep].set(w2)).astype(jnp.bfloat16)
        self.b2_p = jnp.zeros((1, self.rep_p), jnp.float32)
        # relation weight split into the subject / object halves (no concat needed)
        self.w_rel_s = (jnp.zeros((self.rep_p, self.rep_p), jnp.float32)
                        .at[:rep, :rep].set(w_rel[:rep])).astype(jnp.bfloat16)
        self.w_rel_o = (jnp.zeros((self.rep_p, self.rep_p), jnp.float32)
                        .at[:rep, :rep].set(w_rel[rep:])).astype(jnp.bfloat16)
        self.b_rel_p = jnp.zeros((1, self.rep_p), jnp.float32)

        # jit the whole forward compute so the glue (ROI gather, pad/cast,
        # pair gather) is fused by XLA around the two Pallas calls
        self._jit_forward = jax.jit(self._forward_impl)

    # ---- traced compute path (under jax.jit) ---- #
    def _forward_impl(self, feats, proposals, subj_idx, obj_idx):
        pooled_all = []
        for img_idx, boxes in enumerate(proposals):
            pooled = roi_pool_single(feats[img_idx], boxes, self.pool_size)
            pooled_all.append(pooled.reshape(boxes.shape[0], -1))
        pooled_flat = jnp.concatenate(pooled_all, axis=0)        # [total, n_dim] f32

        # pad the contraction dim to the K-tiled width, cast MXU operand to bf16
        pad_k = self.d_in_p - pooled_flat.shape[1]
        if pad_k:
            pooled_flat = jnp.pad(pooled_flat, ((0, 0), (0, pad_k)))
        pooled_bf16 = pooled_flat.astype(jnp.bfloat16)

        # hot path 1: per-box 2-layer MLP (Pallas, row+K tiled, bf16 MXU, f32 acc)
        box_feats = box_mlp(pooled_bf16, self.w1_p, self.b1_p,
                            self.w2_p, self.b2_p, tile_k=self.tile_k)
        # box_feats: [total_boxes, rep_p] bf16 (lane-padded; pad cols are zero)

        # glue: gather subject / object reps per relation pair
        subj = jnp.take(box_feats, subj_idx, axis=0)
        obj = jnp.take(box_feats, obj_idx, axis=0)

        # hot path 2: fused subj/obj fc + ReLU (Pallas, split weights, no concat)
        rel = rel_fc(subj, obj, self.w_rel_s, self.w_rel_o, self.b_rel_p)
        return rel[:, :self.representation_size]

    def forward(self, x, proposals, rel_pair_idxs):
        """x: list of feature maps (single level used), each [N, C, H, W] (NCHW).
        proposals: list (per image) of [M_i, 4] boxes (x1, y1, x2, y2).
        rel_pair_idxs: list (per image) of [K_i, 2] int pair indices (local).
        Returns: [sum_i K_i, representation_size] relation features."""
        feats = x[0]                                   # single-level feature map
        offsets, total = [], 0
        for boxes in proposals:
            offsets.append(total)
            total += boxes.shape[0]
        subj_idx = jnp.concatenate(
            [rp[:, 0] + off for rp, off in zip(rel_pair_idxs, offsets)], axis=0)
        obj_idx = jnp.concatenate(
            [rp[:, 1] + off for rp, off in zip(rel_pair_idxs, offsets)], axis=0)
        return self._jit_forward(feats, tuple(proposals), subj_idx, obj_idx)


# ---------------------------------- main ------------------------------------ #

def _make_boxes(key, n, H, W):
    c = jax.random.uniform(key, (n, 4), jnp.float32)
    x1 = c[:, 0] * (W - 2)
    y1 = c[:, 1] * (H - 2)
    x2 = x1 + 1.0 + c[:, 2] * (W - 1 - x1)
    y2 = y1 + 1.0 + c[:, 3] * (H - 1 - y1)
    return jnp.stack([x1, y1, x2, y2], axis=-1)


if __name__ == "__main__":
    key = jax.random.PRNGKey(0)
    N, C, H, W = 2, 4, 16, 16
    POOL, HIDDEN, REP = 4, 64, 32
    BOXES_PER_IMG, PAIRS_PER_IMG = 4, 4

    k_feat, k_box0, k_box1, k_pair, k_param = jax.random.split(key, 5)
    feature_maps = [jax.random.normal(k_feat, (N, C, H, W), jnp.float32)]
    proposals = [
        _make_boxes(k_box0, BOXES_PER_IMG, H, W),
        _make_boxes(k_box1, BOXES_PER_IMG, H, W),
    ]
    pair_keys = jax.random.split(k_pair, N)
    rel_pair_idxs = [
        jax.random.randint(pk, (PAIRS_PER_IMG, 2), 0, BOXES_PER_IMG, jnp.int32)
        for pk in pair_keys
    ]

    extractor = PallasROIRelationFeatureExtractor(
        in_channels=C, pool_size=POOL, hidden=HIDDEN,
        representation_size=REP, key=k_param)

    out = extractor.forward(feature_maps, proposals, rel_pair_idxs)
    out = jax.block_until_ready(out)
    assert out.shape == (N * PAIRS_PER_IMG, REP), out.shape
    assert bool(jnp.all(jnp.isfinite(out)))
    print("KERNEL_OK")
</pallas_src>

<mosaic_0001>
module attributes {stable_mosaic.version = 11 : i64} {
  func.func @_box_mlp_kernel(%arg0: i32, %arg1: i32, %arg2: memref<16x128xbf16, #tpu.memory_space<vmem>>, %arg3: memref<128x128xbf16, #tpu.memory_space<vmem>>, %arg4: memref<1x128xf32, #tpu.memory_space<vmem>>, %arg5: memref<128x128xbf16, #tpu.memory_space<vmem>>, %arg6: memref<1x128xf32, #tpu.memory_space<vmem>>, %arg7: memref<16x128xbf16, #tpu.memory_space<vmem>>, %arg8: memref<16x128xf32, #tpu.memory_space<vmem>>) attributes {dimension_semantics = [#tpu.dimension_semantics<parallel>, #tpu.dimension_semantics<arbitrary>], iteration_bounds = array<i64: 1, 1>, scalar_prefetch = 0 : i64, scratch_operands = 1 : i64, tpu.core_type = #tpu.core_type<tc>, window_params = [{transform_indices = @transform_0, window_bounds = array<i64: 16, 128>}, {transform_indices = @transform_1, window_bounds = array<i64: 128, 128>}, {pipeline_mode = #tpu.pipeline_mode<synchronous>, transform_indices = @transform_2, window_bounds = array<i64: 1, 128>}, {pipeline_mode = #tpu.pipeline_mode<synchronous>, transform_indices = @transform_3, window_bounds = array<i64: 128, 128>}, {pipeline_mode = #tpu.pipeline_mode<synchronous>, transform_indices = @transform_4, window_bounds = array<i64: 1, 128>}, {transform_indices = @transform_5, window_bounds = array<i64: 16, 128>}]} {
    %c0_i32 = arith.constant 0 : i32
    %0 = arith.cmpi eq, %arg1, %c0_i32 : i32
    %1 = arith.extui %0 : i1 to i32
    %c0_i32_0 = arith.constant 0 : i32
    %2 = arith.cmpi ne, %1, %c0_i32_0 : i32
    scf.if %2 {
      %cst_10 = arith.constant 0.000000e+00 : f32
      %12 = vector.broadcast %cst_10 : f32 to vector<16x128xf32>
      %c0_11 = arith.constant 0 : index
      %c0_12 = arith.constant 0 : index
      %13 = vector.load %arg8[%c0_11, %c0_12] : memref<16x128xf32, #tpu.memory_space<vmem>>, vector<16x128xf32>
      tpu.vector_store %arg8[%c0_11, %c0_12], %12 {strides = array<i32>} : memref<16x128xf32, #tpu.memory_space<vmem>>, vector<16x128xf32>,
    } else {
    }
    %c0 = arith.constant 0 : index
    %c0_1 = arith.constant 0 : index
    %3 = vector.load %arg8[%c0, %c0_1] : memref<16x128xf32, #tpu.memory_space<vmem>>, vector<16x128xf32>
    %c0_2 = arith.constant 0 : index
    %c0_3 = arith.constant 0 : index
    %4 = vector.load %arg2[%c0_2, %c0_3] : memref<16x128xbf16, #tpu.memory_space<vmem>>, vector<16x128xbf16>
    %c0_4 = arith.constant 0 : index
    %c0_5 = arith.constant 0 : index
    %5 = vector.load %arg3[%c0_4, %c0_5] : memref<128x128xbf16, #tpu.memory_space<vmem>>, vector<128x128xbf16>
    %cst = arith.constant dense<0.000000e+00> : vector<16x128xf32>
    %6 = tpu.matmul %4, %5, %cst {dimension_numbers = #tpu.dot_dimension_numbers<[1], [0], [0], [1], [0, 0, 1, 1], [], []>} : vector<16x128xbf16>, vector<128x128xbf16>, vector<16x128xf32> -> vector<16x128xf32>
    %7 = arith.addf %3, %6 : vector<16x128xf32>
    %c0_6 = arith.constant 0 : index
    %c0_7 = arith.constant 0 : index
    %8 = vector.load %arg8[%c0_6, %c0_7] : memref<16x128xf32, #tpu.memory_space<vmem>>, vector<16x128xf32>
    tpu.vector_store %arg8[%c0_6, %c0_7], %7 {strides = array<i32>} : memref<16x128xf32, #tpu.memory_space<vmem>>, vector<16x128xf32>,
    %c0_i32_8 = arith.constant 0 : i32
    %9 = arith.cmpi eq, %arg1, %c0_i32_8 : i32
    %10 = arith.extui %9 : i1 to i32
    %c0_i32_9 = arith.constant 0 : i32
    %11 = arith.cmpi ne, %10, %c0_i32_9 : i32
    scf.if %11 {
      %c0_10 = arith.constant 0 : index
      %c0_11 = arith.constant 0 : index
      %12 = vector.load %arg8[%c0_10, %c0_11] : memref<16x128xf32, #tpu.memory_space<vmem>>, vector<16x128xf32>
      %c0_12 = arith.constant 0 : index
      %c0_13 = arith.constant 0 : index
      %13 = vector.load %arg4[%c0_12, %c0_13] : memref<1x128xf32, #tpu.memory_space<vmem>>, vector<1x128xf32>
      %14 = vector.broadcast %13 : vector<1x128xf32> to vector<16x128xf32>
      %15 = arith.addf %12, %14 : vector<16x128xf32>
      %cst_14 = arith.constant 0.000000e+00 : f32
      %16 = vector.broadcast %cst_14 : f32 to vector<16x128xf32>
      %17 = arith.maximumf %15, %16 : vector<16x128xf32>
      %18 = arith.truncf %17 : vector<16x128xf32> to vector<16x128xbf16>
      %c0_15 = arith.constant 0 : index
      %c0_16 = arith.constant 0 : index
      %19 = vector.load %arg5[%c0_15, %c0_16] : memref<128x128xbf16, #tpu.memory_space<vmem>>, vector<128x128xbf16>
      %cst_17 = arith.constant dense<0.000000e+00> : vector<16x128xf32>
      %20 = tpu.matmul %18, %19, %cst_17 {dimension_numbers = #tpu.dot_dimension_numbers<[1], [0], [0], [1], [0, 0, 1, 1], [], []>} : vector<16x128xbf16>, vector<128x128xbf16>, vector<16x128xf32> -> vector<16x128xf32>
      %c0_18 = arith.constant 0 : index
      %c0_19 = arith.constant 0 : index
      %21 = vector.load %arg6[%c0_18, %c0_19] : memref<1x128xf32, #tpu.memory_space<vmem>>, vector<1x128xf32>
      %22 = vector.broadcast %21 : vector<1x128xf32> to vector<16x128xf32>
      %23 = arith.addf %20, %22 : vector<16x128xf32>
      %cst_20 = arith.constant 0.000000e+00 : f32
      %24 = vector.broadcast %cst_20 : f32 to vector<16x128xf32>
      %25 = arith.maximumf %23, %24 : vector<16x128xf32>
      %26 = arith.truncf %25 : vector<16x128xf32> to vector<16x128xbf16>
      %c0_21 = arith.constant 0 : index
      %c0_22 = arith.constant 0 : index
      %27 = vector.load %arg7[%c0_21, %c0_22] : memref<16x128xbf16, #tpu.memory_space<vmem>>, vector<16x128xbf16>
      tpu.vector_store %arg7[%c0_21, %c0_22], %26 {strides = array<i32>} : memref<16x128xbf16, #tpu.memory_space<vmem>>, vector<16x128xbf16>,
    } else {
    }
    return
  }
  func.func @transform_0(%arg0: i32, %arg1: i32) -> (i32, i32) {
    %c0_i32 = arith.constant 0 : i32
    return %arg0, %arg1 : i32, i32
  }
  func.func @transform_1(%arg0: i32, %arg1: i32) -> (i32, i32) {
    %c0_i32 = arith.constant 0 : i32
    %c0_i32_0 = arith.constant 0 : i32
    return %arg1, %c0_i32 : i32, i32
  }
  func.func @transform_2(%arg0: i32, %arg1: i32) -> (i32, i32) {
    %c0_i32 = arith.constant 0 : i32
    %c0_i32_0 = arith.constant 0 : i32
    %c0_i32_1 = arith.constant 0 : i32
    return %c0_i32, %c0_i32_0 : i32, i32
  }
  func.func @transform_3(%arg0: i32, %arg1: i32) -> (i32, i32) {
    %c0_i32 = arith.constant 0 : i32
    %c0_i32_0 = arith.constant 0 : i32
    %c0_i32_1 = arith.constant 0 : i32
    return %c0_i32, %c0_i32_0 : i32, i32
  }
  func.func @transform_4(%arg0: i32, %arg1: i32) -> (i32, i32) {
    %c0_i32 = arith.constant 0 : i32
    %c0_i32_0 = arith.constant 0 : i32
    %c0_i32_1 = arith.constant 0 : i32
    return %c0_i32, %c0_i32_0 : i32, i32
  }
  func.func @transform_5(%arg0: i32, %arg1: i32) -> (i32, i32) {
    %c0_i32 = arith.constant 0 : i32
    %c0_i32_0 = arith.constant 0 : i32
    return %arg0, %c0_i32 : i32, i32
  }
}

module attributes {stable_mosaic.version = 11 : i64} {
  func.func @_rel_fc_kernel(%arg0: i32, %arg1: memref<16x128xbf16, #tpu.memory_space<vmem>>, %arg2: memref<16x128xbf16, #tpu.memory_space<vmem>>, %arg3: memref<128x128xbf16, #tpu.memory_space<vmem>>, %arg4: memref<128x128xbf16, #tpu.memory_space<vmem>>, %arg5: memref<1x128xf32, #tpu.memory_space<vmem>>, %arg6: memref<16x128xf32, #tpu.memory_space<vmem>>) attributes {dimension_semantics = [#tpu.dimension_semantics<parallel>], iteration_bounds = array<i64: 1>, scalar_prefetch = 0 : i64, scratch_operands = 0 : i64, tpu.core_type = #tpu.core_type<tc>, window_params = [{transform_indices = @transform_0, window_bounds = array<i64: 16, 128>}, {transform_indices = @transform_1, window_bounds = array<i64: 16, 128>}, {pipeline_mode = #tpu.pipeline_mode<synchronous>, transform_indices = @transform_2, window_bounds = array<i64: 128, 128>}, {pipeline_mode = #tpu.pipeline_mode<synchronous>, transform_indices = @transform_3, window_bounds = array<i64: 128, 128>}, {pipeline_mode = #tpu.pipeline_mode<synchronous>, transform_indices = @transform_4, window_bounds = array<i64: 1, 128>}, {transform_indices = @transform_5, window_bounds = array<i64: 16, 128>}]} {
    %c0 = arith.constant 0 : index
    %c0_0 = arith.constant 0 : index
    %0 = vector.load %arg1[%c0, %c0_0] : memref<16x128xbf16, #tpu.memory_space<vmem>>, vector<16x128xbf16>
    %c0_1 = arith.constant 0 : index
    %c0_2 = arith.constant 0 : index
    %1 = vector.load %arg3[%c0_1, %c0_2] : memref<128x128xbf16, #tpu.memory_space<vmem>>, vector<128x128xbf16>
    %cst = arith.constant dense<0.000000e+00> : vector<16x128xf32>
    %2 = tpu.matmul %0, %1, %cst {dimension_numbers = #tpu.dot_dimension_numbers<[1], [0], [0], [1], [0, 0, 1, 1], [], []>} : vector<16x128xbf16>, vector<128x128xbf16>, vector<16x128xf32> -> vector<16x128xf32>
    %c0_3 = arith.constant 0 : index
    %c0_4 = arith.constant 0 : index
    %3 = vector.load %arg2[%c0_3, %c0_4] : memref<16x128xbf16, #tpu.memory_space<vmem>>, vector<16x128xbf16>
    %c0_5 = arith.constant 0 : index
    %c0_6 = arith.constant 0 : index
    %4 = vector.load %arg4[%c0_5, %c0_6] : memref<128x128xbf16, #tpu.memory_space<vmem>>, vector<128x128xbf16>
    %cst_7 = arith.constant dense<0.000000e+00> : vector<16x128xf32>
    %5 = tpu.matmul %3, %4, %cst_7 {dimension_numbers = #tpu.dot_dimension_numbers<[1], [0], [0], [1], [0, 0, 1, 1], [], []>} : vector<16x128xbf16>, vector<128x128xbf16>, vector<16x128xf32> -> vector<16x128xf32>
    %6 = arith.addf %2, %5 : vector<16x128xf32>
    %c0_8 = arith.constant 0 : index
    %c0_9 = arith.constant 0 : index
    %7 = vector.load %arg5[%c0_8, %c0_9] : memref<1x128xf32, #tpu.memory_space<vmem>>, vector<1x128xf32>
    %8 = vector.broadcast %7 : vector<1x128xf32> to vector<16x128xf32>
    %9 = arith.addf %6, %8 : vector<16x128xf32>
    %cst_10 = arith.constant 0.000000e+00 : f32
    %10 = vector.broadcast %cst_10 : f32 to vector<16x128xf32>
    %11 = arith.maximumf %9, %10 : vector<16x128xf32>
    %c0_11 = arith.constant 0 : index
    %c0_12 = arith.constant 0 : index
    %12 = vector.load %arg6[%c0_11, %c0_12] : memref<16x128xf32, #tpu.memory_space<vmem>>, vector<16x128xf32>
    tpu.vector_store %arg6[%c0_11, %c0_12], %11 {strides = array<i32>} : memref<16x128xf32, #tpu.memory_space<vmem>>, vector<16x128xf32>,
    return
  }
  func.func @transform_0(%arg0: i32) -> (i32, i32) {
    %c0_i32 = arith.constant 0 : i32
    %c0_i32_0 = arith.constant 0 : i32
    return %arg0, %c0_i32 : i32, i32
  }
  func.func @transform_1(%arg0: i32) -> (i32, i32) {
    %c0_i32 = arith.constant 0 : i32
    %c0_i32_0 = arith.constant 0 : i32
    return %arg0, %c0_i32 : i32, i32
  }
  func.func @transform_2(%arg0: i32) -> (i32, i32) {
    %c0_i32 = arith.constant 0 : i32
    %c0_i32_0 = arith.constant 0 : i32
    %c0_i32_1 = arith.constant 0 : i32
    return %c0_i32, %c0_i32_0 : i32, i32
  }
  func.func @transform_3(%arg0: i32) -> (i32, i32) {
    %c0_i32 = arith.constant 0 : i32
    %c0_i32_0 = arith.constant 0 : i32
    %c0_i32_1 = arith.constant 0 : i32
    return %c0_i32, %c0_i32_0 : i32, i32
  }
  func.func @transform_4(%arg0: i32) -> (i32, i32) {
    %c0_i32 = arith.constant 0 : i32
    %c0_i32_0 = arith.constant 0 : i32
    %c0_i32_1 = arith.constant 0 : i32
    return %c0_i32, %c0_i32_0 : i32, i32
  }
  func.func @transform_5(%arg0: i32) -> (i32, i32) {
    %c0_i32 = arith.constant 0 : i32
    %c0_i32_0 = arith.constant 0 : i32
    return %arg0, %c0_i32 : i32, i32
  }
}

</mosaic_0001>

<llo_original>
// kernel: _forward_impl.2
$region0: #{_forward_impl.2}
  #allocation0 [shape = 'u32[]', space=smem, size = 0x4, offset = 0x4, fixed_abs, tag = 'smem constant byte address 0x4 - core index']
  #allocation1 [shape = 'u32[72,128]{1,0:T(1,128)}', space=vmem, size = 0x9000, scoped, tag = 'internal scratch']
  #allocation2 [shape = 'f32[16,128]{1,0:T(8,128)}', space=vmem, size = 0x2000, scoped, tag = 'scratch operand']
  %s0 = inlined_call_operand.vmem [shape: bf16[16,128], index: 0, kind: input, shape index: {}]
  %s1 = inlined_call_operand.vmem [shape: bf16[128,128], index: 1, kind: input, shape index: {}]
  %s2 = inlined_call_operand.vmem [shape: f32[1,128], index: 2, kind: input, shape index: {}, may-alias: {2,4}]
  %s3 = inlined_call_operand.vmem [shape: bf16[128,128], index: 3, kind: input, shape index: {}]
  %s4 = inlined_call_operand.vmem [shape: f32[1,128], index: 4, kind: input, shape index: {}, may-alias: {2,4}]
  %s5 = inlined_call_operand.vmem [shape: bf16[16,128], index: 5, kind: output, shape index: {}]
  %s6 = sld [smem:[#allocation0]]
  $region38: #{_forward_impl.2} parent=0
    _
  %s8 = ssub.s32 1, %s6
  %s9 = scalar_select 0, %s8, %s6
  // Predicated region
  $region2: #{_forward_impl.2} parent=0 // pred_check
    _
  $region3: #{_forward_impl.2} parent=0 // pred_check_branch
    %11 = sbr.rel (0) target = $region5
  $region4: #{_forward_impl.2} parent=0 // pred_region
    _
  $region5: #{_forward_impl.2} parent=0 // pred_fallthru
    _
  // Predicated region
  $region6: #{_forward_impl.2} parent=0 // pred_check
    _
  $region7: #{_forward_impl.2} parent=0 // pred_check_branch
    %13 = sbr.rel (0) target = $region9
  $region8: #{_forward_impl.2} parent=0 // pred_region
    _
  $region9: #{_forward_impl.2} parent=0 // pred_fallthru
    _
  // Predicated region
  $region10: #{_forward_impl.2} parent=0 // pred_check
    _
  $region11: #{_forward_impl.2} parent=0 // pred_check_branch
    %15 = sbr.rel (0) target = $region13
  $region12: #{_forward_impl.2} parent=0 // pred_region
    _
  $region13: #{_forward_impl.2} parent=0 // pred_fallthru
    _
  // Predicated region
  $region14: #{_forward_impl.2} parent=0 // pred_check
    _
  $region15: #{_forward_impl.2} parent=0 // pred_check_branch
    %17 = sbr.rel (0) target = $region17
  $region16: #{_forward_impl.2} parent=0 // pred_region
    _
  $region17: #{_forward_impl.2} parent=0 // pred_fallthru
    _
  // Predicated region
  $region18: #{_forward_impl.2} parent=0 // pred_check
    _
  $region19: #{_forward_impl.2} parent=0 // pred_check_branch
    %19 = sbr.rel (0) target = $region21
  $region20: #{_forward_impl.2} parent=0 // pred_region
    _
  $region21: #{_forward_impl.2} parent=0 // pred_fallthru
    _
  %p20 = scmp.eq.s32.totalorder 0, 0
  // Predicated region
  $region22: #{_forward_impl.2} parent=0 // pred_check
    %p21 = pneg %p20
  $region23: #{_forward_impl.2} parent=0 // pred_check_branch
    %23 = sbr.rel (%p21) target = $region25
  $region24: #{_forward_impl.2} parent=0 // pred_region
    %24 = vst [vmem:[#allocation2] sm:$0xff] 0.0
    %25 = vst [vmem:[#allocation2 + $0x8] sm:$0xff] 0.0
  $region25: #{_forward_impl.2} parent=0 // pred_fallthru
    _
  %v26 = vld [vmem:[#allocation2] sm:$0xff]
  %v27 = vld [vmem:[#allocation2 + $0x8] sm:$0xff]
  %v28 = vld [vmem:[%s0] sm:$0xf]
  %v29 = vld [vmem:[%s0 + $0x4] sm:$0xf]
  %v30 = vld [vmem:[%s1] sm:$0xf]
  %v31 = vld [vmem:[%s1 + $0x4] sm:$0xf]
  %v32 = vld [vmem:[%s1 + $0x8] sm:$0xf]
  %v33 = vld [vmem:[%s1 + $0xc] sm:$0xf]
  %v34 = vld [vmem:[%s1 + $0x10] sm:$0xf]
  %v35 = vld [vmem:[%s1 + $0x14] sm:$0xf]
  %v36 = vld [vmem:[%s1 + $0x18] sm:$0xf]
  %v37 = vld [vmem:[%s1 + $0x1c] sm:$0xf]
  %v38 = vld [vmem:[%s1 + $0x20] sm:$0xf]
  %v39 = vld [vmem:[%s1 + $0x24] sm:$0xf]
  %v40 = vld [vmem:[%s1 + $0x28] sm:$0xf]
  %v41 = vld [vmem:[%s1 + $0x2c] sm:$0xf]
  %v42 = vld [vmem:[%s1 + $0x30] sm:$0xf]
  %v43 = vld [vmem:[%s1 + $0x34] sm:$0xf]
  %v44 = vld [vmem:[%s1 + $0x38] sm:$0xf]
  %v45 = vld [vmem:[%s1 + $0x3c] sm:$0xf]
  %v48 = vunpack.c.l.b16 %v28
  %v49 = vunpack.c.l.b16 %v29
  %v50 = vpack.c.b16 %v49, %v48
  %v68 = vunpack.c.l.b16 %v30
  %v69 = vunpack.c.l.b16 %v31
  %v70 = vunpack.c.l.b16 %v32
  %v71 = vunpack.c.l.b16 %v33
  %v72 = vunpack.c.l.b16 %v34
  %v73 = vunpack.c.l.b16 %v35
  %v74 = vunpack.c.l.b16 %v36
  %v75 = vunpack.c.l.b16 %v37
  %v76 = vunpack.c.l.b16 %v38
  %v77 = vunpack.c.l.b16 %v39
  %v78 = vunpack.c.l.b16 %v40
  %v79 = vunpack.c.l.b16 %v41
  %v80 = vunpack.c.l.b16 %v42
  %v81 = vunpack.c.l.b16 %v43
  %v82 = vunpack.c.l.b16 %v44
  %v83 = vunpack.c.l.b16 %v45
  %v84 = vpack.c.b16 %v69, %v68
  %v85 = vpack.c.b16 %v71, %v70
  %v86 = vpack.c.b16 %v73, %v72
  %v87 = vpack.c.b16 %v75, %v74
  %v88 = vpack.c.b16 %v77, %v76
  %v89 = vpack.c.b16 %v79, %v78
  %v90 = vpack.c.b16 %v81, %v80
  %v91 = vpack.c.b16 %v83, %v82
  %100 = vmatpush.bf16.msra.mxu0 %v91
  %101 = vmatpush.bf16.msra.mxu0 %v90
  %102 = vmatpush.bf16.msra.mxu0 %v89
  %103 = vmatpush.bf16.msra.mxu0 %v88
  %104 = vmatpush.bf16.msra.mxu0 %v87
  %105 = vmatpush.bf16.msra.mxu0 %v86
  %106 = vmatpush.bf16.msra.mxu0 %v85
  %107 = vmatpush.bf16.msra.mxu0 %v84
  %108 = vmatmul.bf16.gmra.mxu0 %v50
  %v109 = vpop.f32.mrf.mxu0
  %v110 = vadd.f32 0.0, %v109
  %v111 = vpop.f32.mrf.mxu0
  %v112 = vadd.f32 0.0, %v111
  %113 = vdwg.mxu0
  %v114 = vadd.f32 %v26, %v110
  %v115 = vadd.f32 %v27, %v112
  %116 = vst [vmem:[#allocation2] sm:$0xff] %v114
  %117 = vst [vmem:[#allocation2 + $0x8] sm:$0xff] %v115
  // Predicated region
  $region26: #{_forward_impl.2} parent=0 // pred_check
    %p118 = pneg %p20
  $region27: #{_forward_impl.2} parent=0 // pred_check_branch
    %120 = sbr.rel (%p118) target = $region29
  $region28: #{_forward_impl.2} parent=0 // pred_region
    %v121 = vld [vmem:[#allocation2] sm:$0xff]
    %v122 = vld [vmem:[#allocation2 + $0x8] sm:$0xff]
    %v123 = vld [vmem:[%s2] sm:$0x1]
    %v125 = vperm.slane %v123, 0
    %v127 = vadd.f32 %v121, %v125
    %v128 = vadd.f32 %v122, %v125
    %v129 = vmax.f32 %v127, 0.0
    %v130 = vmax.f32 %v128, 0.0
    %v131 = vpack.c.bf16 %v130, %v129
    %v132 = vld [vmem:[%s3] sm:$0xf]
    %v133 = vld [vmem:[%s3 + $0x4] sm:$0xf]
    %v134 = vld [vmem:[%s3 + $0x8] sm:$0xf]
    %v135 = vld [vmem:[%s3 + $0xc] sm:$0xf]
    %v136 = vld [vmem:[%s3 + $0x10] sm:$0xf]
    %v137 = vld [vmem:[%s3 + $0x14] sm:$0xf]
    %v138 = vld [vmem:[%s3 + $0x18] sm:$0xf]
    %v139 = vld [vmem:[%s3 + $0x1c] sm:$0xf]
    %v140 = vld [vmem:[%s3 + $0x20] sm:$0xf]
    %v141 = vld [vmem:[%s3 + $0x24] sm:$0xf]
    %v142 = vld [vmem:[%s3 + $0x28] sm:$0xf]
    %v143 = vld [vmem:[%s3 + $0x2c] sm:$0xf]
    %v144 = vld [vmem:[%s3 + $0x30] sm:$0xf]
    %v145 = vld [vmem:[%s3 + $0x34] sm:$0xf]
    %v146 = vld [vmem:[%s3 + $0x38] sm:$0xf]
    %v147 = vld [vmem:[%s3 + $0x3c] sm:$0xf]
    %v148 = vld [vmem:[%s4] sm:$0x1]
    %v150 = vperm.slane %v148, 0
    %v168 = vunpack.c.l.b16 %v132
    %v169 = vunpack.c.l.b16 %v133
    %v170 = vunpack.c.l.b16 %v134
    %v171 = vunpack.c.l.b16 %v135
    %v172 = vunpack.c.l.b16 %v136
    %v173 = vunpack.c.l.b16 %v137
    %v174 = vunpack.c.l.b16 %v138
    %v175 = vunpack.c.l.b16 %v139
    %v176 = vunpack.c.l.b16 %v140
    %v177 = vunpack.c.l.b16 %v141
    %v178 = vunpack.c.l.b16 %v142
    %v179 = vunpack.c.l.b16 %v143
    %v180 = vunpack.c.l.b16 %v144
    %v181 = vunpack.c.l.b16 %v145
    %v182 = vunpack.c.l.b16 %v146
    %v183 = vunpack.c.l.b16 %v147
    %v184 = vpack.c.b16 %v169, %v168
    %v185 = vpack.c.b16 %v171, %v170
    %v186 = vpack.c.b16 %v173, %v172
    %v187 = vpack.c.b16 %v175, %v174
    %v188 = vpack.c.b16 %v177, %v176
    %v189 = vpack.c.b16 %v179, %v178
    %v190 = vpack.c.b16 %v181, %v180
    %v191 = vpack.c.b16 %v183, %v182
    %200 = vmatpush.bf16.msra.mxu0 %v191
    %201 = vmatpush.bf16.msra.mxu0 %v190
    %202 = vmatpush.bf16.msra.mxu0 %v189
    %203 = vmatpush.bf16.msra.mxu0 %v188
    %204 = vmatpush.bf16.msra.mxu0 %v187
    %205 = vmatpush.bf16.msra.mxu0 %v186
    %206 = vmatpush.bf16.msra.mxu0 %v185
    %207 = vmatpush.bf16.msra.mxu0 %v184
    %208 = vmatmul.bf16.gmra.mxu0 %v131
    %v209 = vpop.f32.mrf.mxu0
    %v210 = vadd.f32 %v150, %v209
    %v211 = vpop.f32.mrf.mxu0
    %v212 = vadd.f32 %v150, %v211
    %213 = vdwg.mxu0
    %v214 = vmax.f32 %v210, 0.0
    %v215 = vmax.f32 %v212, 0.0
    %v216 = vpack.c.bf16 %v214, %v214
    %v217 = vpack.c.bf16 %v215, %v215
    %218 = vst [vmem:[%s5] sm:$0xf] %v216
    %219 = vst [vmem:[%s5 + $0x4] sm:$0xf] %v217
  $region29: #{_forward_impl.2} parent=0 // pred_fallthru
    _
  // Predicated region
  $region30: #{_forward_impl.2} parent=0 // pred_check
    _
  $region31: #{_forward_impl.2} parent=0 // pred_check_branch
    %221 = sbr.rel (0) target = $region33
  $region32: #{_forward_impl.2} parent=0 // pred_region
    _
  $region33: #{_forward_impl.2} parent=0 // pred_fallthru
    _
  // Predicated region
  $region34: #{_forward_impl.2} parent=0 // pred_check
    _
  $region35: #{_forward_impl.2} parent=0 // pred_check_branch
    %223 = sbr.rel (0) target = $region37
  $region36: #{_forward_impl.2} parent=0 // pred_region
    _
  $region37: #{_forward_impl.2} parent=0 // pred_fallthru
    _

// kernel: _forward_impl.3
$region0: #{_forward_impl.3}
  #allocation0 [shape = 'u32[]', space=smem, size = 0x4, offset = 0x4, fixed_abs, tag = 'smem constant byte address 0x4 - core index']
  #allocation1 [shape = 'u32[72,128]{1,0:T(1,128)}', space=vmem, size = 0x9000, scoped, tag = 'internal scratch']
  %s0 = inlined_call_operand.vmem [shape: bf16[16,128], index: 0, kind: input, shape index: {}]
  %s1 = inlined_call_operand.vmem [shape: bf16[16,128], index: 1, kind: input, shape index: {}]
  %s2 = inlined_call_operand.vmem [shape: bf16[128,128], index: 2, kind: input, shape index: {}]
  %s3 = inlined_call_operand.vmem [shape: bf16[128,128], index: 3, kind: input, shape index: {}]
  %s4 = inlined_call_operand.vmem [shape: f32[1,128], index: 4, kind: input, shape index: {}]
  %s5 = inlined_call_operand.vmem [shape: f32[16,128], index: 5, kind: output, shape index: {}]
  %s6 = sld [smem:[#allocation0]]
  $region30: #{_forward_impl.3} parent=0
    _
  %s8 = ssub.s32 1, %s6
  %s9 = scalar_select 0, %s8, %s6
  // Predicated region
  $region2: #{_forward_impl.3} parent=0 // pred_check
    _
  $region3: #{_forward_impl.3} parent=0 // pred_check_branch
    %11 = sbr.rel (0) target = $region5
  $region4: #{_forward_impl.3} parent=0 // pred_region
    _
  $region5: #{_forward_impl.3} parent=0 // pred_fallthru
    _
  // Predicated region
  $region6: #{_forward_impl.3} parent=0 // pred_check
    _
  $region7: #{_forward_impl.3} parent=0 // pred_check_branch
    %13 = sbr.rel (0) target = $region9
  $region8: #{_forward_impl.3} parent=0 // pred_region
    _
  $region9: #{_forward_impl.3} parent=0 // pred_fallthru
    _
  // Predicated region
  $region10: #{_forward_impl.3} parent=0 // pred_check
    _
  $region11: #{_forward_impl.3} parent=0 // pred_check_branch
    %15 = sbr.rel (0) target = $region13
  $region12: #{_forward_impl.3} parent=0 // pred_region
    _
  $region13: #{_forward_impl.3} parent=0 // pred_fallthru
    _
  // Predicated region
  $region14: #{_forward_impl.3} parent=0 // pred_check
    _
  $region15: #{_forward_impl.3} parent=0 // pred_check_branch
    %17 = sbr.rel (0) target = $region17
  $region16: #{_forward_impl.3} parent=0 // pred_region
    _
  $region17: #{_forward_impl.3} parent=0 // pred_fallthru
    _
  // Predicated region
  $region18: #{_forward_impl.3} parent=0 // pred_check
    _
  $region19: #{_forward_impl.3} parent=0 // pred_check_branch
    %19 = sbr.rel (0) target = $region21
  $region20: #{_forward_impl.3} parent=0 // pred_region
    _
  $region21: #{_forward_impl.3} parent=0 // pred_fallthru
    _
  %v20 = vld [vmem:[%s0] sm:$0xf]
  %v21 = vld [vmem:[%s0 + $0x4] sm:$0xf]
  %v22 = vld [vmem:[%s2] sm:$0xf]
  %v23 = vld [vmem:[%s2 + $0x4] sm:$0xf]
  %v24 = vld [vmem:[%s2 + $0x8] sm:$0xf]
  %v25 = vld [vmem:[%s2 + $0xc] sm:$0xf]
  %v26 = vld [vmem:[%s2 + $0x10] sm:$0xf]
  %v27 = vld [vmem:[%s2 + $0x14] sm:$0xf]
  %v28 = vld [vmem:[%s2 + $0x18] sm:$0xf]
  %v29 = vld [vmem:[%s2 + $0x1c] sm:$0xf]
  %v30 = vld [vmem:[%s2 + $0x20] sm:$0xf]
  %v31 = vld [vmem:[%s2 + $0x24] sm:$0xf]
  %v32 = vld [vmem:[%s2 + $0x28] sm:$0xf]
  %v33 = vld [vmem:[%s2 + $0x2c] sm:$0xf]
  %v34 = vld [vmem:[%s2 + $0x30] sm:$0xf]
  %v35 = vld [vmem:[%s2 + $0x34] sm:$0xf]
  %v36 = vld [vmem:[%s2 + $0x38] sm:$0xf]
  %v37 = vld [vmem:[%s2 + $0x3c] sm:$0xf]
  %v38 = vld [vmem:[%s1] sm:$0xf]
  %v39 = vld [vmem:[%s1 + $0x4] sm:$0xf]
  %v40 = vld [vmem:[%s3] sm:$0xf]
  %v41 = vld [vmem:[%s3 + $0x4] sm:$0xf]
  %v42 = vld [vmem:[%s3 + $0x8] sm:$0xf]
  %v43 = vld [vmem:[%s3 + $0xc] sm:$0xf]
  %v44 = vld [vmem:[%s3 + $0x10] sm:$0xf]
  %v45 = vld [vmem:[%s3 + $0x14] sm:$0xf]
  %v46 = vld [vmem:[%s3 + $0x18] sm:$0xf]
  %v47 = vld [vmem:[%s3 + $0x1c] sm:$0xf]
  %v48 = vld [vmem:[%s3 + $0x20] sm:$0xf]
  %v49 = vld [vmem:[%s3 + $0x24] sm:$0xf]
  %v50 = vld [vmem:[%s3 + $0x28] sm:$0xf]
  %v51 = vld [vmem:[%s3 + $0x2c] sm:$0xf]
  %v52 = vld [vmem:[%s3 + $0x30] sm:$0xf]
  %v53 = vld [vmem:[%s3 + $0x34] sm:$0xf]
  %v54 = vld [vmem:[%s3 + $0x38] sm:$0xf]
  %v55 = vld [vmem:[%s3 + $0x3c] sm:$0xf]
  %v58 = vunpack.c.l.b16 %v38
  %v59 = vunpack.c.l.b16 %v39
  %v60 = vpack.c.b16 %v59, %v58
  %v78 = vunpack.c.l.b16 %v40
  %v79 = vunpack.c.l.b16 %v41
  %v80 = vunpack.c.l.b16 %v42
  %v81 = vunpack.c.l.b16 %v43
  %v82 = vunpack.c.l.b16 %v44
  %v83 = vunpack.c.l.b16 %v45
  %v84 = vunpack.c.l.b16 %v46
  %v85 = vunpack.c.l.b16 %v47
  %v86 = vunpack.c.l.b16 %v48
  %v87 = vunpack.c.l.b16 %v49
  %v88 = vunpack.c.l.b16 %v50
  %v89 = vunpack.c.l.b16 %v51
  %v90 = vunpack.c.l.b16 %v52
  %v91 = vunpack.c.l.b16 %v53
  %v92 = vunpack.c.l.b16 %v54
  %v93 = vunpack.c.l.b16 %v55
  %v94 = vpack.c.b16 %v79, %v78
  %v95 = vpack.c.b16 %v81, %v80
  %v96 = vpack.c.b16 %v83, %v82
  %v97 = vpack.c.b16 %v85, %v84
  %v98 = vpack.c.b16 %v87, %v86
  %v99 = vpack.c.b16 %v89, %v88
  %v100 = vpack.c.b16 %v91, %v90
  %v101 = vpack.c.b16 %v93, %v92
  %110 = vmatpush.bf16.msra.mxu0 %v101
  %111 = vmatpush.bf16.msra.mxu0 %v100
  %112 = vmatpush.bf16.msra.mxu0 %v99
  %113 = vmatpush.bf16.msra.mxu0 %v98
  %114 = vmatpush.bf16.msra.mxu0 %v97
  %115 = vmatpush.bf16.msra.mxu0 %v96
  %116 = vmatpush.bf16.msra.mxu0 %v95
  %117 = vmatpush.bf16.msra.mxu0 %v94
  %118 = vmatmul.bf16.gmra.mxu0 %v60
  %v119 = vpop.f32.mrf.mxu0
  %v120 = vadd.f32 0.0, %v119
  %v121 = vpop.f32.mrf.mxu0
  %v122 = vadd.f32 0.0, %v121
  %123 = vdwg.mxu0
  %v126 = vunpack.c.l.b16 %v20
  %v127 = vunpack.c.l.b16 %v21
  %v128 = vpack.c.b16 %v127, %v126
  %v146 = vunpack.c.l.b16 %v22
  %v147 = vunpack.c.l.b16 %v23
  %v148 = vunpack.c.l.b16 %v24
  %v149 = vunpack.c.l.b16 %v25
  %v150 = vunpack.c.l.b16 %v26
  %v151 = vunpack.c.l.b16 %v27
  %v152 = vunpack.c.l.b16 %v28
  %v153 = vunpack.c.l.b16 %v29
  %v154 = vunpack.c.l.b16 %v30
  %v155 = vunpack.c.l.b16 %v31
  %v156 = vunpack.c.l.b16 %v32
  %v157 = vunpack.c.l.b16 %v33
  %v158 = vunpack.c.l.b16 %v34
  %v159 = vunpack.c.l.b16 %v35
  %v160 = vunpack.c.l.b16 %v36
  %v161 = vunpack.c.l.b16 %v37
  %v162 = vpack.c.b16 %v147, %v146
  %v163 = vpack.c.b16 %v149, %v148
  %v164 = vpack.c.b16 %v151, %v150
  %v165 = vpack.c.b16 %v153, %v152
  %v166 = vpack.c.b16 %v155, %v154
  %v167 = vpack.c.b16 %v157, %v156
  %v168 = vpack.c.b16 %v159, %v158
  %v169 = vpack.c.b16 %v161, %v160
  %178 = vmatpush.bf16.msra.mxu0 %v169
  %179 = vmatpush.bf16.msra.mxu0 %v168
  %180 = vmatpush.bf16.msra.mxu0 %v167
  %181 = vmatpush.bf16.msra.mxu0 %v166
  %182 = vmatpush.bf16.msra.mxu0 %v165
  %183 = vmatpush.bf16.msra.mxu0 %v164
  %184 = vmatpush.bf16.msra.mxu0 %v163
  %185 = vmatpush.bf16.msra.mxu0 %v162
  %186 = vmatmul.bf16.gmra.mxu0 %v128
  %v187 = vpop.f32.mrf.mxu0
  %v188 = vadd.f32 %v120, %v187
  %v189 = vpop.f32.mrf.mxu0
  %v190 = vadd.f32 %v122, %v189
  %191 = vdwg.mxu0
  %v192 = vld [vmem:[%s4] sm:$0x1]
  %v194 = vperm.slane %v192, 0
  %v196 = vadd.f32 %v188, %v194
  %v197 = vadd.f32 %v190, %v194
  %v198 = vmax.f32 %v196, 0.0
  %v199 = vmax.f32 %v197, 0.0
  %200 = vst [vmem:[%s5] sm:$0xff] %v198
  %201 = vst [vmem:[%s5 + $0x8] sm:$0xff] %v199
  // Predicated region
  $region22: #{_forward_impl.3} parent=0 // pred_check
    _
  $region23: #{_forward_impl.3} parent=0 // pred_check_branch
    %203 = sbr.rel (0) target = $region25
  $region24: #{_forward_impl.3} parent=0 // pred_region
    _
  $region25: #{_forward_impl.3} parent=0 // pred_fallthru
    _
  // Predicated region
  $region26: #{_forward_impl.3} parent=0 // pred_check
    _
  $region27: #{_forward_impl.3} parent=0 // pred_check_branch
    %205 = sbr.rel (0) target = $region29
  $region28: #{_forward_impl.3} parent=0 // pred_region
    _
  $region29: #{_forward_impl.3} parent=0 // pred_fallthru
    _

</llo_original>
